<compile_context>
chip_gen: v7x
topology: tpu7x:2x2x1
jax: 0.10.0
libtpu: 0.0.40
codegen_flags: <defaults>
</compile_context>

<pallas_src>
import jax
import jax.numpy as jnp
import numpy as np
from jax.experimental import pallas as pl
from jax.experimental.pallas import tpu as pltpu

_HID = 8                        # hidden width of every head
_PER_HEAD = 4 * _HID + 1        # 8 + 8 + 8 + 8 + 1 = 33 packed floats per head
_HEADS = ("mu", "V", "L")
_MU, _VB, _LB = 0, _PER_HEAD, 2 * _PER_HEAD   # packed-parameter base offsets


def _cdiv(a, b):
    return -(-a // b)


def _naf_kernel(p_ref, x_ref, out_ref):
    """Fused NAF forward over one (3, TR, C) tile.

    p_ref  : (99,) f32 in SMEM — packed weights, resident across the grid.
    x_ref  : (3, TR, C) f32 VMEM tile: plane 0 = a, planes 1-2 = state.
    out_ref: (3, TR, C) f32 VMEM tile: plane 0 = Q, plane 1 = V, plane 2 = mu.
    """
    n_strips = x_ref.shape[1] // 8

    def strip(r, carry):
        row = pl.multiple_of(r * 8, 8)
        a = x_ref[0, pl.ds(row, 8), :]       # (8, C)
        s0 = x_ref[1, pl.ds(row, 8), :]
        s1 = x_ref[2, pl.ds(row, 8), :]

        # Three fused heads: Linear(2,8) -> ReLU -> Linear(8,1), fully
        # unrolled over the hidden dim as VPU scalar-broadcast multiply/adds
        # (weights are SMEM scalars).  Live set per strip: a, s0, s1, mu, V,
        # L, h  ->  ~7 x (8, C) values, comfortably inside the vreg file.
        mu = jnp.full_like(a, p_ref[_MU + 4 * _HID])    # b2 (mu head)
        V = jnp.full_like(a, p_ref[_VB + 4 * _HID])     # b2 (V head)
        L = jnp.full_like(a, p_ref[_LB + 4 * _HID])     # b2 (L head, pre-scaled)
        for j in range(_HID):
            h = jnp.maximum(
                s0 * p_ref[_MU + j] + s1 * p_ref[_MU + _HID + j]
                + p_ref[_MU + 2 * _HID + j], 0.0)
            mu = mu + h * p_ref[_MU + 3 * _HID + j]
            h = jnp.maximum(
                s0 * p_ref[_VB + j] + s1 * p_ref[_VB + _HID + j]
                + p_ref[_VB + 2 * _HID + j], 0.0)
            V = V + h * p_ref[_VB + 3 * _HID + j]
            h = jnp.maximum(
                s0 * p_ref[_LB + j] + s1 * p_ref[_LB + _HID + j]
                + p_ref[_LB + 2 * _HID + j], 0.0)
            L = L + h * p_ref[_LB + 3 * _HID + j]

        mu = jnp.square(mu)
        # The 1/2 factor is folded into the packed L-head W2/b2 (x sqrt(0.5)).
        A = jnp.square(L) * jnp.square(a - mu)
        e = jnp.exp(-(A + V))                 # EUP slot
        Q = 1.0 / (1.0 + e)                   # reciprocal -> EUP + Newton

        out_ref[0, pl.ds(row, 8), :] = Q
        out_ref[1, pl.ds(row, 8), :] = V
        out_ref[2, pl.ds(row, 8), :] = mu
        return carry

    # Strips are independent; unrolled straight-line code gives the scheduler
    # full visibility while each strip's stores end its live ranges.
    jax.lax.fori_loop(0, n_strips, strip, 0, unroll=True)


def pack_params(params):
    """Pack the 12 tiny tensors into one (99,) f32 buffer, per-head layout:
    [W1 row0 (8), W1 row1 (8), b1 (8), W2 (8), b2 (1)].
    The L head's W2/b2 are pre-scaled by sqrt(0.5) so the kernel never
    multiplies by the constant 1/2."""
    chunks = []
    for name in _HEADS:
        w1, b1, w2, b2 = params[name]        # (2,8), (1,8), (8,1), (1,1)
        w2f = jnp.ravel(w2)
        b2f = jnp.ravel(b2)
        if name == "L":
            scale = np.float32(np.sqrt(0.5))
            w2f = w2f * scale
            b2f = b2f * scale
        chunks.extend([jnp.ravel(w1[0, :]), jnp.ravel(w1[1, :]),
                       jnp.ravel(b1), w2f, b2f])
    return jnp.concatenate(chunks).astype(jnp.float32)


def _tiling_for(B, *, max_lanes=512, max_rows=128):
    """Choose (C, TR, grid): C lanes (mult of 128), TR rows (mult of 8), so the
    padded batch grid*TR*C is not grossly larger than B."""
    C = int(min(max_lanes, max(128, 128 * _cdiv(B, 8 * 128))))
    rows = 8 * _cdiv(_cdiv(B, C), 8)
    grid = int(_cdiv(rows, max_rows))
    TR = int(8 * _cdiv(rows, 8 * grid))
    return C, TR, grid


def _naf_call(xt, packed, TR, core_parallel):
    """Raw pallas_call on a lane-dense (3, R, C) slab."""
    _, R, C = xt.shape
    tile = pl.BlockSpec((3, TR, C), lambda i: (0, i, 0))
    sem = pltpu.CORE_PARALLEL if core_parallel else pltpu.PARALLEL
    return pl.pallas_call(
        _naf_kernel,
        grid=(R // TR,),
        in_specs=[
            pl.BlockSpec(memory_space=pltpu.MemorySpace.SMEM),   # packed params
            tile,                                                # x tiles
        ],
        out_specs=tile,
        out_shape=jax.ShapeDtypeStruct((3, R, C), jnp.float32),
        compiler_params=pltpu.CompilerParams(dimension_semantics=(sem,)),
    )(packed, xt)


def _pick_tr(R, max_rows):
    best = 8
    for tr in range(8, min(R, max_rows) + 1, 8):
        if R % tr == 0:
            best = tr
    return best


def naf_forward_packed(xt, packed_params, *, max_rows=128, core_parallel=False):
    """Zero-plumbing path: xt is an already lane-dense (3, R, C) f32 slab
    (plane 0 = a, planes 1-2 = s; R % 8 == 0, C % 128 == 0, padding allowed).
    Returns the packed (3, R, C) slab with planes (Q, V, mu); consumers must
    keep slicing off any batch padding themselves."""
    _, R, _ = xt.shape
    return _naf_call(xt, packed_params, _pick_tr(R, max_rows), core_parallel)


def naf_forward(x, params, *, max_lanes=512, max_rows=128, core_parallel=False):
    """PyTorch-compatible interface.  x: (B, 3) float32 (col 0 = action a,
    cols 1:3 = state s).  Returns (Q, V, mu), each (B, 1) float32.
    Jit this function so the layout plumbing fuses with the surrounding graph;
    use naf_forward_packed to avoid it entirely."""
    B = x.shape[0]
    assert x.shape[1] == 3, "expected x of shape (B, 3): [a, s0, s1]"

    C, TR, grid = _tiling_for(B, max_lanes=max_lanes, max_rows=max_rows)
    R = TR * grid
    Bp = R * C

    xt = jnp.transpose(x.astype(jnp.float32))           # (3, B), batch -> lanes
    if Bp != B:
        xt = jnp.pad(xt, ((0, 0), (0, Bp - B)))          # zero-pad, sliced off below
    xt = xt.reshape(3, R, C)

    out = _naf_call(xt, pack_params(params), TR, core_parallel)

    out = out.reshape(3, Bp)[:, :B]
    return out[0][:, None], out[1][:, None], out[2][:, None]


def init_params(key):
    """Deterministic synthetic init mimicking PyTorch Linear defaults
    (uniform(-1/sqrt(fan_in), 1/sqrt(fan_in)))."""
    def linear(key, fan_in, fan_out):
        kw, kb = jax.random.split(key)
        bound = 1.0 / np.sqrt(fan_in)
        w = jax.random.uniform(kw, (fan_in, fan_out), jnp.float32, -bound, bound)
        b = jax.random.uniform(kb, (1, fan_out), jnp.float32, -bound, bound)
        return w, b

    keys = jax.random.split(key, 6)
    params = {}
    for name, (k1, k2) in zip(_HEADS,
                              ((keys[0], keys[1]), (keys[2], keys[3]),
                               (keys[4], keys[5]))):
        w1, b1 = linear(k1, 2, _HID)
        w2, b2 = linear(k2, _HID, 1)
        params[name] = (w1, b1, w2, b2)
    return params


def naf_reference(x, params):
    """Plain-JAX reference of the PyTorch forward for validation."""
    a = x[:, 0:1]
    s = x[:, 1:3]

    def mlp(p):
        w1, b1, w2, b2 = p
        h = jnp.maximum(s @ w1 + b1, 0.0)
        return h @ w2 + b2

    mu = jnp.square(mlp(params["mu"]))
    A = 0.5 * jnp.square(mlp(params["L"])) * jnp.square(a - mu)
    V = mlp(params["V"])
    Q = jax.nn.sigmoid(A + V)
    return Q, V, mu


if __name__ == "__main__":
    key = jax.random.PRNGKey(0)
    k_x, k_p = jax.random.split(key)

    B = 16
    x = jax.random.normal(k_x, (B, 3), dtype=jnp.float32)
    params = init_params(k_p)

    fwd = jax.jit(naf_forward)           # fuse layout plumbing + kernel dispatch
    Q, V, mu = fwd(x, params)
    jax.block_until_ready((Q, V, mu))

    Q_ref, V_ref, mu_ref = naf_reference(x, params)
    np.testing.assert_allclose(np.asarray(Q), np.asarray(Q_ref), rtol=1e-5, atol=1e-5)
    np.testing.assert_allclose(np.asarray(V), np.asarray(V_ref), rtol=1e-5, atol=1e-5)
    np.testing.assert_allclose(np.asarray(mu), np.asarray(mu_ref), rtol=1e-5, atol=1e-5)

    print("KERNEL_OK")
</pallas_src>

<mosaic_0001>
module attributes {stable_mosaic.version = 11 : i64} {
  func.func @_naf_kernel(%arg0: i32, %arg1: memref<99xf32, #tpu.memory_space<smem>>, %arg2: memref<3x8x128xf32, #tpu.memory_space<vmem>>, %arg3: memref<3x8x128xf32, #tpu.memory_space<vmem>>) attributes {dimension_semantics = [#tpu.dimension_semantics<parallel>], iteration_bounds = array<i64: 1>, scalar_prefetch = 0 : i64, scratch_operands = 0 : i64, tpu.core_type = #tpu.core_type<tc>, window_params = [{transform_indices = @transform_0, window_bounds = array<i64: 99>}, {transform_indices = @transform_1, window_bounds = array<i64: 3, 8, 128>}, {transform_indices = @transform_2, window_bounds = array<i64: 3, 8, 128>}]} {
    %c0_i32 = arith.constant 0 : i32
    %c8_i32 = arith.constant 8 : i32
    %0 = arith.muli %c0_i32, %c8_i32 : i32
    %1 = tpu.assume_multiple %0, 8 : i32
    %c0 = arith.constant 0 : index
    %2 = arith.index_cast %1 : i32 to index
    %c0_0 = arith.constant 0 : index
    %3 = vector.load %arg2[%c0, %2, %c0_0] : memref<3x8x128xf32, #tpu.memory_space<vmem>>, vector<1x8x128xf32>
    %4 = vector.shape_cast %3 : vector<1x8x128xf32> to vector<8x128xf32>
    %c1 = arith.constant 1 : index
    %5 = arith.index_cast %1 : i32 to index
    %c0_1 = arith.constant 0 : index
    %6 = vector.load %arg2[%c1, %5, %c0_1] : memref<3x8x128xf32, #tpu.memory_space<vmem>>, vector<1x8x128xf32>
    %7 = vector.shape_cast %6 : vector<1x8x128xf32> to vector<8x128xf32>
    %c2 = arith.constant 2 : index
    %8 = arith.index_cast %1 : i32 to index
    %c0_2 = arith.constant 0 : index
    %9 = vector.load %arg2[%c2, %8, %c0_2] : memref<3x8x128xf32, #tpu.memory_space<vmem>>, vector<1x8x128xf32>
    %10 = vector.shape_cast %9 : vector<1x8x128xf32> to vector<8x128xf32>
    %c32 = arith.constant 32 : index
    %11 = memref.load %arg1[%c32] : memref<99xf32, #tpu.memory_space<smem>>
    %12 = vector.broadcast %11 : f32 to vector<8x128xf32>
    %c65 = arith.constant 65 : index
    %13 = memref.load %arg1[%c65] : memref<99xf32, #tpu.memory_space<smem>>
    %14 = vector.broadcast %13 : f32 to vector<8x128xf32>
    %c98 = arith.constant 98 : index
    %15 = memref.load %arg1[%c98] : memref<99xf32, #tpu.memory_space<smem>>
    %16 = vector.broadcast %15 : f32 to vector<8x128xf32>
    %c0_3 = arith.constant 0 : index
    %17 = memref.load %arg1[%c0_3] : memref<99xf32, #tpu.memory_space<smem>>
    %18 = vector.broadcast %17 : f32 to vector<8x128xf32>
    %19 = arith.mulf %7, %18 : vector<8x128xf32>
    %c8 = arith.constant 8 : index
    %20 = memref.load %arg1[%c8] : memref<99xf32, #tpu.memory_space<smem>>
    %21 = vector.broadcast %20 : f32 to vector<8x128xf32>
    %22 = arith.mulf %10, %21 : vector<8x128xf32>
    %23 = arith.addf %19, %22 : vector<8x128xf32>
    %c16 = arith.constant 16 : index
    %24 = memref.load %arg1[%c16] : memref<99xf32, #tpu.memory_space<smem>>
    %25 = vector.broadcast %24 : f32 to vector<8x128xf32>
    %26 = arith.addf %23, %25 : vector<8x128xf32>
    %cst = arith.constant 0.000000e+00 : f32
    %27 = vector.broadcast %cst : f32 to vector<8x128xf32>
    %28 = arith.maximumf %26, %27 : vector<8x128xf32>
    %c24 = arith.constant 24 : index
    %29 = memref.load %arg1[%c24] : memref<99xf32, #tpu.memory_space<smem>>
    %30 = vector.broadcast %29 : f32 to vector<8x128xf32>
    %31 = arith.mulf %28, %30 : vector<8x128xf32>
    %32 = arith.addf %12, %31 : vector<8x128xf32>
    %c33 = arith.constant 33 : index
    %33 = memref.load %arg1[%c33] : memref<99xf32, #tpu.memory_space<smem>>
    %34 = vector.broadcast %33 : f32 to vector<8x128xf32>
    %35 = arith.mulf %7, %34 : vector<8x128xf32>
    %c41 = arith.constant 41 : index
    %36 = memref.load %arg1[%c41] : memref<99xf32, #tpu.memory_space<smem>>
    %37 = vector.broadcast %36 : f32 to vector<8x128xf32>
    %38 = arith.mulf %10, %37 : vector<8x128xf32>
    %39 = arith.addf %35, %38 : vector<8x128xf32>
    %c49 = arith.constant 49 : index
    %40 = memref.load %arg1[%c49] : memref<99xf32, #tpu.memory_space<smem>>
    %41 = vector.broadcast %40 : f32 to vector<8x128xf32>
    %42 = arith.addf %39, %41 : vector<8x128xf32>
    %cst_4 = arith.constant 0.000000e+00 : f32
    %43 = vector.broadcast %cst_4 : f32 to vector<8x128xf32>
    %44 = arith.maximumf %42, %43 : vector<8x128xf32>
    %c57 = arith.constant 57 : index
    %45 = memref.load %arg1[%c57] : memref<99xf32, #tpu.memory_space<smem>>
    %46 = vector.broadcast %45 : f32 to vector<8x128xf32>
    %47 = arith.mulf %44, %46 : vector<8x128xf32>
    %48 = arith.addf %14, %47 : vector<8x128xf32>
    %c66 = arith.constant 66 : index
    %49 = memref.load %arg1[%c66] : memref<99xf32, #tpu.memory_space<smem>>
    %50 = vector.broadcast %49 : f32 to vector<8x128xf32>
    %51 = arith.mulf %7, %50 : vector<8x128xf32>
    %c74 = arith.constant 74 : index
    %52 = memref.load %arg1[%c74] : memref<99xf32, #tpu.memory_space<smem>>
    %53 = vector.broadcast %52 : f32 to vector<8x128xf32>
    %54 = arith.mulf %10, %53 : vector<8x128xf32>
    %55 = arith.addf %51, %54 : vector<8x128xf32>
    %c82 = arith.constant 82 : index
    %56 = memref.load %arg1[%c82] : memref<99xf32, #tpu.memory_space<smem>>
    %57 = vector.broadcast %56 : f32 to vector<8x128xf32>
    %58 = arith.addf %55, %57 : vector<8x128xf32>
    %cst_5 = arith.constant 0.000000e+00 : f32
    %59 = vector.broadcast %cst_5 : f32 to vector<8x128xf32>
    %60 = arith.maximumf %58, %59 : vector<8x128xf32>
    %c90 = arith.constant 90 : index
    %61 = memref.load %arg1[%c90] : memref<99xf32, #tpu.memory_space<smem>>
    %62 = vector.broadcast %61 : f32 to vector<8x128xf32>
    %63 = arith.mulf %60, %62 : vector<8x128xf32>
    %64 = arith.addf %16, %63 : vector<8x128xf32>
    %c1_6 = arith.constant 1 : index
    %65 = memref.load %arg1[%c1_6] : memref<99xf32, #tpu.memory_space<smem>>
    %66 = vector.broadcast %65 : f32 to vector<8x128xf32>
    %67 = arith.mulf %7, %66 : vector<8x128xf32>
    %c9 = arith.constant 9 : index
    %68 = memref.load %arg1[%c9] : memref<99xf32, #tpu.memory_space<smem>>
    %69 = vector.broadcast %68 : f32 to vector<8x128xf32>
    %70 = arith.mulf %10, %69 : vector<8x128xf32>
    %71 = arith.addf %67, %70 : vector<8x128xf32>
    %c17 = arith.constant 17 : index
    %72 = memref.load %arg1[%c17] : memref<99xf32, #tpu.memory_space<smem>>
    %73 = vector.broadcast %72 : f32 to vector<8x128xf32>
    %74 = arith.addf %71, %73 : vector<8x128xf32>
    %cst_7 = arith.constant 0.000000e+00 : f32
    %75 = vector.broadcast %cst_7 : f32 to vector<8x128xf32>
    %76 = arith.maximumf %74, %75 : vector<8x128xf32>
    %c25 = arith.constant 25 : index
    %77 = memref.load %arg1[%c25] : memref<99xf32, #tpu.memory_space<smem>>
    %78 = vector.broadcast %77 : f32 to vector<8x128xf32>
    %79 = arith.mulf %76, %78 : vector<8x128xf32>
    %80 = arith.addf %32, %79 : vector<8x128xf32>
    %c34 = arith.constant 34 : index
    %81 = memref.load %arg1[%c34] : memref<99xf32, #tpu.memory_space<smem>>
    %82 = vector.broadcast %81 : f32 to vector<8x128xf32>
    %83 = arith.mulf %7, %82 : vector<8x128xf32>
    %c42 = arith.constant 42 : index
    %84 = memref.load %arg1[%c42] : memref<99xf32, #tpu.memory_space<smem>>
    %85 = vector.broadcast %84 : f32 to vector<8x128xf32>
    %86 = arith.mulf %10, %85 : vector<8x128xf32>
    %87 = arith.addf %83, %86 : vector<8x128xf32>
    %c50 = arith.constant 50 : index
    %88 = memref.load %arg1[%c50] : memref<99xf32, #tpu.memory_space<smem>>
    %89 = vector.broadcast %88 : f32 to vector<8x128xf32>
    %90 = arith.addf %87, %89 : vector<8x128xf32>
    %cst_8 = arith.constant 0.000000e+00 : f32
    %91 = vector.broadcast %cst_8 : f32 to vector<8x128xf32>
    %92 = arith.maximumf %90, %91 : vector<8x128xf32>
    %c58 = arith.constant 58 : index
    %93 = memref.load %arg1[%c58] : memref<99xf32, #tpu.memory_space<smem>>
    %94 = vector.broadcast %93 : f32 to vector<8x128xf32>
    %95 = arith.mulf %92, %94 : vector<8x128xf32>
    %96 = arith.addf %48, %95 : vector<8x128xf32>
    %c67 = arith.constant 67 : index
    %97 = memref.load %arg1[%c67] : memref<99xf32, #tpu.memory_space<smem>>
    %98 = vector.broadcast %97 : f32 to vector<8x128xf32>
    %99 = arith.mulf %7, %98 : vector<8x128xf32>
    %c75 = arith.constant 75 : index
    %100 = memref.load %arg1[%c75] : memref<99xf32, #tpu.memory_space<smem>>
    %101 = vector.broadcast %100 : f32 to vector<8x128xf32>
    %102 = arith.mulf %10, %101 : vector<8x128xf32>
    %103 = arith.addf %99, %102 : vector<8x128xf32>
    %c83 = arith.constant 83 : index
    %104 = memref.load %arg1[%c83] : memref<99xf32, #tpu.memory_space<smem>>
    %105 = vector.broadcast %104 : f32 to vector<8x128xf32>
    %106 = arith.addf %103, %105 : vector<8x128xf32>
    %cst_9 = arith.constant 0.000000e+00 : f32
    %107 = vector.broadcast %cst_9 : f32 to vector<8x128xf32>
    %108 = arith.maximumf %106, %107 : vector<8x128xf32>
    %c91 = arith.constant 91 : index
    %109 = memref.load %arg1[%c91] : memref<99xf32, #tpu.memory_space<smem>>
    %110 = vector.broadcast %109 : f32 to vector<8x128xf32>
    %111 = arith.mulf %108, %110 : vector<8x128xf32>
    %112 = arith.addf %64, %111 : vector<8x128xf32>
    %c2_10 = arith.constant 2 : index
    %113 = memref.load %arg1[%c2_10] : memref<99xf32, #tpu.memory_space<smem>>
    %114 = vector.broadcast %113 : f32 to vector<8x128xf32>
    %115 = arith.mulf %7, %114 : vector<8x128xf32>
    %c10 = arith.constant 10 : index
    %116 = memref.load %arg1[%c10] : memref<99xf32, #tpu.memory_space<smem>>
    %117 = vector.broadcast %116 : f32 to vector<8x128xf32>
    %118 = arith.mulf %10, %117 : vector<8x128xf32>
    %119 = arith.addf %115, %118 : vector<8x128xf32>
    %c18 = arith.constant 18 : index
    %120 = memref.load %arg1[%c18] : memref<99xf32, #tpu.memory_space<smem>>
    %121 = vector.broadcast %120 : f32 to vector<8x128xf32>
    %122 = arith.addf %119, %121 : vector<8x128xf32>
    %cst_11 = arith.constant 0.000000e+00 : f32
    %123 = vector.broadcast %cst_11 : f32 to vector<8x128xf32>
    %124 = arith.maximumf %122, %123 : vector<8x128xf32>
    %c26 = arith.constant 26 : index
    %125 = memref.load %arg1[%c26] : memref<99xf32, #tpu.memory_space<smem>>
    %126 = vector.broadcast %125 : f32 to vector<8x128xf32>
    %127 = arith.mulf %124, %126 : vector<8x128xf32>
    %128 = arith.addf %80, %127 : vector<8x128xf32>
    %c35 = arith.constant 35 : index
    %129 = memref.load %arg1[%c35] : memref<99xf32, #tpu.memory_space<smem>>
    %130 = vector.broadcast %129 : f32 to vector<8x128xf32>
    %131 = arith.mulf %7, %130 : vector<8x128xf32>
    %c43 = arith.constant 43 : index
    %132 = memref.load %arg1[%c43] : memref<99xf32, #tpu.memory_space<smem>>
    %133 = vector.broadcast %132 : f32 to vector<8x128xf32>
    %134 = arith.mulf %10, %133 : vector<8x128xf32>
    %135 = arith.addf %131, %134 : vector<8x128xf32>
    %c51 = arith.constant 51 : index
    %136 = memref.load %arg1[%c51] : memref<99xf32, #tpu.memory_space<smem>>
    %137 = vector.broadcast %136 : f32 to vector<8x128xf32>
    %138 = arith.addf %135, %137 : vector<8x128xf32>
    %cst_12 = arith.constant 0.000000e+00 : f32
    %139 = vector.broadcast %cst_12 : f32 to vector<8x128xf32>
    %140 = arith.maximumf %138, %139 : vector<8x128xf32>
    %c59 = arith.constant 59 : index
    %141 = memref.load %arg1[%c59] : memref<99xf32, #tpu.memory_space<smem>>
    %142 = vector.broadcast %141 : f32 to vector<8x128xf32>
    %143 = arith.mulf %140, %142 : vector<8x128xf32>
    %144 = arith.addf %96, %143 : vector<8x128xf32>
    %c68 = arith.constant 68 : index
    %145 = memref.load %arg1[%c68] : memref<99xf32, #tpu.memory_space<smem>>
    %146 = vector.broadcast %145 : f32 to vector<8x128xf32>
    %147 = arith.mulf %7, %146 : vector<8x128xf32>
    %c76 = arith.constant 76 : index
    %148 = memref.load %arg1[%c76] : memref<99xf32, #tpu.memory_space<smem>>
    %149 = vector.broadcast %148 : f32 to vector<8x128xf32>
    %150 = arith.mulf %10, %149 : vector<8x128xf32>
    %151 = arith.addf %147, %150 : vector<8x128xf32>
    %c84 = arith.constant 84 : index
    %152 = memref.load %arg1[%c84] : memref<99xf32, #tpu.memory_space<smem>>
    %153 = vector.broadcast %152 : f32 to vector<8x128xf32>
    %154 = arith.addf %151, %153 : vector<8x128xf32>
    %cst_13 = arith.constant 0.000000e+00 : f32
    %155 = vector.broadcast %cst_13 : f32 to vector<8x128xf32>
    %156 = arith.maximumf %154, %155 : vector<8x128xf32>
    %c92 = arith.constant 92 : index
    %157 = memref.load %arg1[%c92] : memref<99xf32, #tpu.memory_space<smem>>
    %158 = vector.broadcast %157 : f32 to vector<8x128xf32>
    %159 = arith.mulf %156, %158 : vector<8x128xf32>
    %160 = arith.addf %112, %159 : vector<8x128xf32>
    %c3 = arith.constant 3 : index
    %161 = memref.load %arg1[%c3] : memref<99xf32, #tpu.memory_space<smem>>
    %162 = vector.broadcast %161 : f32 to vector<8x128xf32>
    %163 = arith.mulf %7, %162 : vector<8x128xf32>
    %c11 = arith.constant 11 : index
    %164 = memref.load %arg1[%c11] : memref<99xf32, #tpu.memory_space<smem>>
    %165 = vector.broadcast %164 : f32 to vector<8x128xf32>
    %166 = arith.mulf %10, %165 : vector<8x128xf32>
    %167 = arith.addf %163, %166 : vector<8x128xf32>
    %c19 = arith.constant 19 : index
    %168 = memref.load %arg1[%c19] : memref<99xf32, #tpu.memory_space<smem>>
    %169 = vector.broadcast %168 : f32 to vector<8x128xf32>
    %170 = arith.addf %167, %169 : vector<8x128xf32>
    %cst_14 = arith.constant 0.000000e+00 : f32
    %171 = vector.broadcast %cst_14 : f32 to vector<8x128xf32>
    %172 = arith.maximumf %170, %171 : vector<8x128xf32>
    %c27 = arith.constant 27 : index
    %173 = memref.load %arg1[%c27] : memref<99xf32, #tpu.memory_space<smem>>
    %174 = vector.broadcast %173 : f32 to vector<8x128xf32>
    %175 = arith.mulf %172, %174 : vector<8x128xf32>
    %176 = arith.addf %128, %175 : vector<8x128xf32>
    %c36 = arith.constant 36 : index
    %177 = memref.load %arg1[%c36] : memref<99xf32, #tpu.memory_space<smem>>
    %178 = vector.broadcast %177 : f32 to vector<8x128xf32>
    %179 = arith.mulf %7, %178 : vector<8x128xf32>
    %c44 = arith.constant 44 : index
    %180 = memref.load %arg1[%c44] : memref<99xf32, #tpu.memory_space<smem>>
    %181 = vector.broadcast %180 : f32 to vector<8x128xf32>
    %182 = arith.mulf %10, %181 : vector<8x128xf32>
    %183 = arith.addf %179, %182 : vector<8x128xf32>
    %c52 = arith.constant 52 : index
    %184 = memref.load %arg1[%c52] : memref<99xf32, #tpu.memory_space<smem>>
    %185 = vector.broadcast %184 : f32 to vector<8x128xf32>
    %186 = arith.addf %183, %185 : vector<8x128xf32>
    %cst_15 = arith.constant 0.000000e+00 : f32
    %187 = vector.broadcast %cst_15 : f32 to vector<8x128xf32>
    %188 = arith.maximumf %186, %187 : vector<8x128xf32>
    %c60 = arith.constant 60 : index
    %189 = memref.load %arg1[%c60] : memref<99xf32, #tpu.memory_space<smem>>
    %190 = vector.broadcast %189 : f32 to vector<8x128xf32>
    %191 = arith.mulf %188, %190 : vector<8x128xf32>
    %192 = arith.addf %144, %191 : vector<8x128xf32>
    %c69 = arith.constant 69 : index
    %193 = memref.load %arg1[%c69] : memref<99xf32, #tpu.memory_space<smem>>
    %194 = vector.broadcast %193 : f32 to vector<8x128xf32>
    %195 = arith.mulf %7, %194 : vector<8x128xf32>
    %c77 = arith.constant 77 : index
    %196 = memref.load %arg1[%c77] : memref<99xf32, #tpu.memory_space<smem>>
    %197 = vector.broadcast %196 : f32 to vector<8x128xf32>
    %198 = arith.mulf %10, %197 : vector<8x128xf32>
    %199 = arith.addf %195, %198 : vector<8x128xf32>
    %c85 = arith.constant 85 : index
    %200 = memref.load %arg1[%c85] : memref<99xf32, #tpu.memory_space<smem>>
    %201 = vector.broadcast %200 : f32 to vector<8x128xf32>
    %202 = arith.addf %199, %201 : vector<8x128xf32>
    %cst_16 = arith.constant 0.000000e+00 : f32
    %203 = vector.broadcast %cst_16 : f32 to vector<8x128xf32>
    %204 = arith.maximumf %202, %203 : vector<8x128xf32>
    %c93 = arith.constant 93 : index
    %205 = memref.load %arg1[%c93] : memref<99xf32, #tpu.memory_space<smem>>
    %206 = vector.broadcast %205 : f32 to vector<8x128xf32>
    %207 = arith.mulf %204, %206 : vector<8x128xf32>
    %208 = arith.addf %160, %207 : vector<8x128xf32>
    %c4 = arith.constant 4 : index
    %209 = memref.load %arg1[%c4] : memref<99xf32, #tpu.memory_space<smem>>
    %210 = vector.broadcast %209 : f32 to vector<8x128xf32>
    %211 = arith.mulf %7, %210 : vector<8x128xf32>
    %c12 = arith.constant 12 : index
    %212 = memref.load %arg1[%c12] : memref<99xf32, #tpu.memory_space<smem>>
    %213 = vector.broadcast %212 : f32 to vector<8x128xf32>
    %214 = arith.mulf %10, %213 : vector<8x128xf32>
    %215 = arith.addf %211, %214 : vector<8x128xf32>
    %c20 = arith.constant 20 : index
    %216 = memref.load %arg1[%c20] : memref<99xf32, #tpu.memory_space<smem>>
    %217 = vector.broadcast %216 : f32 to vector<8x128xf32>
    %218 = arith.addf %215, %217 : vector<8x128xf32>
    %cst_17 = arith.constant 0.000000e+00 : f32
    %219 = vector.broadcast %cst_17 : f32 to vector<8x128xf32>
    %220 = arith.maximumf %218, %219 : vector<8x128xf32>
    %c28 = arith.constant 28 : index
    %221 = memref.load %arg1[%c28] : memref<99xf32, #tpu.memory_space<smem>>
    %222 = vector.broadcast %221 : f32 to vector<8x128xf32>
    %223 = arith.mulf %220, %222 : vector<8x128xf32>
    %224 = arith.addf %176, %223 : vector<8x128xf32>
    %c37 = arith.constant 37 : index
    %225 = memref.load %arg1[%c37] : memref<99xf32, #tpu.memory_space<smem>>
    %226 = vector.broadcast %225 : f32 to vector<8x128xf32>
    %227 = arith.mulf %7, %226 : vector<8x128xf32>
    %c45 = arith.constant 45 : index
    %228 = memref.load %arg1[%c45] : memref<99xf32, #tpu.memory_space<smem>>
    %229 = vector.broadcast %228 : f32 to vector<8x128xf32>
    %230 = arith.mulf %10, %229 : vector<8x128xf32>
    %231 = arith.addf %227, %230 : vector<8x128xf32>
    %c53 = arith.constant 53 : index
    %232 = memref.load %arg1[%c53] : memref<99xf32, #tpu.memory_space<smem>>
    %233 = vector.broadcast %232 : f32 to vector<8x128xf32>
    %234 = arith.addf %231, %233 : vector<8x128xf32>
    %cst_18 = arith.constant 0.000000e+00 : f32
    %235 = vector.broadcast %cst_18 : f32 to vector<8x128xf32>
    %236 = arith.maximumf %234, %235 : vector<8x128xf32>
    %c61 = arith.constant 61 : index
    %237 = memref.load %arg1[%c61] : memref<99xf32, #tpu.memory_space<smem>>
    %238 = vector.broadcast %237 : f32 to vector<8x128xf32>
    %239 = arith.mulf %236, %238 : vector<8x128xf32>
    %240 = arith.addf %192, %239 : vector<8x128xf32>
    %c70 = arith.constant 70 : index
    %241 = memref.load %arg1[%c70] : memref<99xf32, #tpu.memory_space<smem>>
    %242 = vector.broadcast %241 : f32 to vector<8x128xf32>
    %243 = arith.mulf %7, %242 : vector<8x128xf32>
    %c78 = arith.constant 78 : index
    %244 = memref.load %arg1[%c78] : memref<99xf32, #tpu.memory_space<smem>>
    %245 = vector.broadcast %244 : f32 to vector<8x128xf32>
    %246 = arith.mulf %10, %245 : vector<8x128xf32>
    %247 = arith.addf %243, %246 : vector<8x128xf32>
    %c86 = arith.constant 86 : index
    %248 = memref.load %arg1[%c86] : memref<99xf32, #tpu.memory_space<smem>>
    %249 = vector.broadcast %248 : f32 to vector<8x128xf32>
    %250 = arith.addf %247, %249 : vector<8x128xf32>
    %cst_19 = arith.constant 0.000000e+00 : f32
    %251 = vector.broadcast %cst_19 : f32 to vector<8x128xf32>
    %252 = arith.maximumf %250, %251 : vector<8x128xf32>
    %c94 = arith.constant 94 : index
    %253 = memref.load %arg1[%c94] : memref<99xf32, #tpu.memory_space<smem>>
    %254 = vector.broadcast %253 : f32 to vector<8x128xf32>
    %255 = arith.mulf %252, %254 : vector<8x128xf32>
    %256 = arith.addf %208, %255 : vector<8x128xf32>
    %c5 = arith.constant 5 : index
    %257 = memref.load %arg1[%c5] : memref<99xf32, #tpu.memory_space<smem>>
    %258 = vector.broadcast %257 : f32 to vector<8x128xf32>
    %259 = arith.mulf %7, %258 : vector<8x128xf32>
    %c13 = arith.constant 13 : index
    %260 = memref.load %arg1[%c13] : memref<99xf32, #tpu.memory_space<smem>>
    %261 = vector.broadcast %260 : f32 to vector<8x128xf32>
    %262 = arith.mulf %10, %261 : vector<8x128xf32>
    %263 = arith.addf %259, %262 : vector<8x128xf32>
    %c21 = arith.constant 21 : index
    %264 = memref.load %arg1[%c21] : memref<99xf32, #tpu.memory_space<smem>>
    %265 = vector.broadcast %264 : f32 to vector<8x128xf32>
    %266 = arith.addf %263, %265 : vector<8x128xf32>
    %cst_20 = arith.constant 0.000000e+00 : f32
    %267 = vector.broadcast %cst_20 : f32 to vector<8x128xf32>
    %268 = arith.maximumf %266, %267 : vector<8x128xf32>
    %c29 = arith.constant 29 : index
    %269 = memref.load %arg1[%c29] : memref<99xf32, #tpu.memory_space<smem>>
    %270 = vector.broadcast %269 : f32 to vector<8x128xf32>
    %271 = arith.mulf %268, %270 : vector<8x128xf32>
    %272 = arith.addf %224, %271 : vector<8x128xf32>
    %c38 = arith.constant 38 : index
    %273 = memref.load %arg1[%c38] : memref<99xf32, #tpu.memory_space<smem>>
    %274 = vector.broadcast %273 : f32 to vector<8x128xf32>
    %275 = arith.mulf %7, %274 : vector<8x128xf32>
    %c46 = arith.constant 46 : index
    %276 = memref.load %arg1[%c46] : memref<99xf32, #tpu.memory_space<smem>>
    %277 = vector.broadcast %276 : f32 to vector<8x128xf32>
    %278 = arith.mulf %10, %277 : vector<8x128xf32>
    %279 = arith.addf %275, %278 : vector<8x128xf32>
    %c54 = arith.constant 54 : index
    %280 = memref.load %arg1[%c54] : memref<99xf32, #tpu.memory_space<smem>>
    %281 = vector.broadcast %280 : f32 to vector<8x128xf32>
    %282 = arith.addf %279, %281 : vector<8x128xf32>
    %cst_21 = arith.constant 0.000000e+00 : f32
    %283 = vector.broadcast %cst_21 : f32 to vector<8x128xf32>
    %284 = arith.maximumf %282, %283 : vector<8x128xf32>
    %c62 = arith.constant 62 : index
    %285 = memref.load %arg1[%c62] : memref<99xf32, #tpu.memory_space<smem>>
    %286 = vector.broadcast %285 : f32 to vector<8x128xf32>
    %287 = arith.mulf %284, %286 : vector<8x128xf32>
    %288 = arith.addf %240, %287 : vector<8x128xf32>
    %c71 = arith.constant 71 : index
    %289 = memref.load %arg1[%c71] : memref<99xf32, #tpu.memory_space<smem>>
    %290 = vector.broadcast %289 : f32 to vector<8x128xf32>
    %291 = arith.mulf %7, %290 : vector<8x128xf32>
    %c79 = arith.constant 79 : index
    %292 = memref.load %arg1[%c79] : memref<99xf32, #tpu.memory_space<smem>>
    %293 = vector.broadcast %292 : f32 to vector<8x128xf32>
    %294 = arith.mulf %10, %293 : vector<8x128xf32>
    %295 = arith.addf %291, %294 : vector<8x128xf32>
    %c87 = arith.constant 87 : index
    %296 = memref.load %arg1[%c87] : memref<99xf32, #tpu.memory_space<smem>>
    %297 = vector.broadcast %296 : f32 to vector<8x128xf32>
    %298 = arith.addf %295, %297 : vector<8x128xf32>
    %cst_22 = arith.constant 0.000000e+00 : f32
    %299 = vector.broadcast %cst_22 : f32 to vector<8x128xf32>
    %300 = arith.maximumf %298, %299 : vector<8x128xf32>
    %c95 = arith.constant 95 : index
    %301 = memref.load %arg1[%c95] : memref<99xf32, #tpu.memory_space<smem>>
    %302 = vector.broadcast %301 : f32 to vector<8x128xf32>
    %303 = arith.mulf %300, %302 : vector<8x128xf32>
    %304 = arith.addf %256, %303 : vector<8x128xf32>
    %c6 = arith.constant 6 : index
    %305 = memref.load %arg1[%c6] : memref<99xf32, #tpu.memory_space<smem>>
    %306 = vector.broadcast %305 : f32 to vector<8x128xf32>
    %307 = arith.mulf %7, %306 : vector<8x128xf32>
    %c14 = arith.constant 14 : index
    %308 = memref.load %arg1[%c14] : memref<99xf32, #tpu.memory_space<smem>>
    %309 = vector.broadcast %308 : f32 to vector<8x128xf32>
    %310 = arith.mulf %10, %309 : vector<8x128xf32>
    %311 = arith.addf %307, %310 : vector<8x128xf32>
    %c22 = arith.constant 22 : index
    %312 = memref.load %arg1[%c22] : memref<99xf32, #tpu.memory_space<smem>>
    %313 = vector.broadcast %312 : f32 to vector<8x128xf32>
    %314 = arith.addf %311, %313 : vector<8x128xf32>
    %cst_23 = arith.constant 0.000000e+00 : f32
    %315 = vector.broadcast %cst_23 : f32 to vector<8x128xf32>
    %316 = arith.maximumf %314, %315 : vector<8x128xf32>
    %c30 = arith.constant 30 : index
    %317 = memref.load %arg1[%c30] : memref<99xf32, #tpu.memory_space<smem>>
    %318 = vector.broadcast %317 : f32 to vector<8x128xf32>
    %319 = arith.mulf %316, %318 : vector<8x128xf32>
    %320 = arith.addf %272, %319 : vector<8x128xf32>
    %c39 = arith.constant 39 : index
    %321 = memref.load %arg1[%c39] : memref<99xf32, #tpu.memory_space<smem>>
    %322 = vector.broadcast %321 : f32 to vector<8x128xf32>
    %323 = arith.mulf %7, %322 : vector<8x128xf32>
    %c47 = arith.constant 47 : index
    %324 = memref.load %arg1[%c47] : memref<99xf32, #tpu.memory_space<smem>>
    %325 = vector.broadcast %324 : f32 to vector<8x128xf32>
    %326 = arith.mulf %10, %325 : vector<8x128xf32>
    %327 = arith.addf %323, %326 : vector<8x128xf32>
    %c55 = arith.constant 55 : index
    %328 = memref.load %arg1[%c55] : memref<99xf32, #tpu.memory_space<smem>>
    %329 = vector.broadcast %328 : f32 to vector<8x128xf32>
    %330 = arith.addf %327, %329 : vector<8x128xf32>
    %cst_24 = arith.constant 0.000000e+00 : f32
    %331 = vector.broadcast %cst_24 : f32 to vector<8x128xf32>
    %332 = arith.maximumf %330, %331 : vector<8x128xf32>
    %c63 = arith.constant 63 : index
    %333 = memref.load %arg1[%c63] : memref<99xf32, #tpu.memory_space<smem>>
    %334 = vector.broadcast %333 : f32 to vector<8x128xf32>
    %335 = arith.mulf %332, %334 : vector<8x128xf32>
    %336 = arith.addf %288, %335 : vector<8x128xf32>
    %c72 = arith.constant 72 : index
    %337 = memref.load %arg1[%c72] : memref<99xf32, #tpu.memory_space<smem>>
    %338 = vector.broadcast %337 : f32 to vector<8x128xf32>
    %339 = arith.mulf %7, %338 : vector<8x128xf32>
    %c80 = arith.constant 80 : index
    %340 = memref.load %arg1[%c80] : memref<99xf32, #tpu.memory_space<smem>>
    %341 = vector.broadcast %340 : f32 to vector<8x128xf32>
    %342 = arith.mulf %10, %341 : vector<8x128xf32>
    %343 = arith.addf %339, %342 : vector<8x128xf32>
    %c88 = arith.constant 88 : index
    %344 = memref.load %arg1[%c88] : memref<99xf32, #tpu.memory_space<smem>>
    %345 = vector.broadcast %344 : f32 to vector<8x128xf32>
    %346 = arith.addf %343, %345 : vector<8x128xf32>
    %cst_25 = arith.constant 0.000000e+00 : f32
    %347 = vector.broadcast %cst_25 : f32 to vector<8x128xf32>
    %348 = arith.maximumf %346, %347 : vector<8x128xf32>
    %c96 = arith.constant 96 : index
    %349 = memref.load %arg1[%c96] : memref<99xf32, #tpu.memory_space<smem>>
    %350 = vector.broadcast %349 : f32 to vector<8x128xf32>
    %351 = arith.mulf %348, %350 : vector<8x128xf32>
    %352 = arith.addf %304, %351 : vector<8x128xf32>
    %c7 = arith.constant 7 : index
    %353 = memref.load %arg1[%c7] : memref<99xf32, #tpu.memory_space<smem>>
    %354 = vector.broadcast %353 : f32 to vector<8x128xf32>
    %355 = arith.mulf %7, %354 : vector<8x128xf32>
    %c15 = arith.constant 15 : index
    %356 = memref.load %arg1[%c15] : memref<99xf32, #tpu.memory_space<smem>>
    %357 = vector.broadcast %356 : f32 to vector<8x128xf32>
    %358 = arith.mulf %10, %357 : vector<8x128xf32>
    %359 = arith.addf %355, %358 : vector<8x128xf32>
    %c23 = arith.constant 23 : index
    %360 = memref.load %arg1[%c23] : memref<99xf32, #tpu.memory_space<smem>>
    %361 = vector.broadcast %360 : f32 to vector<8x128xf32>
    %362 = arith.addf %359, %361 : vector<8x128xf32>
    %cst_26 = arith.constant 0.000000e+00 : f32
    %363 = vector.broadcast %cst_26 : f32 to vector<8x128xf32>
    %364 = arith.maximumf %362, %363 : vector<8x128xf32>
    %c31 = arith.constant 31 : index
    %365 = memref.load %arg1[%c31] : memref<99xf32, #tpu.memory_space<smem>>
    %366 = vector.broadcast %365 : f32 to vector<8x128xf32>
    %367 = arith.mulf %364, %366 : vector<8x128xf32>
    %368 = arith.addf %320, %367 : vector<8x128xf32>
    %c40 = arith.constant 40 : index
    %369 = memref.load %arg1[%c40] : memref<99xf32, #tpu.memory_space<smem>>
    %370 = vector.broadcast %369 : f32 to vector<8x128xf32>
    %371 = arith.mulf %7, %370 : vector<8x128xf32>
    %c48 = arith.constant 48 : index
    %372 = memref.load %arg1[%c48] : memref<99xf32, #tpu.memory_space<smem>>
    %373 = vector.broadcast %372 : f32 to vector<8x128xf32>
    %374 = arith.mulf %10, %373 : vector<8x128xf32>
    %375 = arith.addf %371, %374 : vector<8x128xf32>
    %c56 = arith.constant 56 : index
    %376 = memref.load %arg1[%c56] : memref<99xf32, #tpu.memory_space<smem>>
    %377 = vector.broadcast %376 : f32 to vector<8x128xf32>
    %378 = arith.addf %375, %377 : vector<8x128xf32>
    %cst_27 = arith.constant 0.000000e+00 : f32
    %379 = vector.broadcast %cst_27 : f32 to vector<8x128xf32>
    %380 = arith.maximumf %378, %379 : vector<8x128xf32>
    %c64 = arith.constant 64 : index
    %381 = memref.load %arg1[%c64] : memref<99xf32, #tpu.memory_space<smem>>
    %382 = vector.broadcast %381 : f32 to vector<8x128xf32>
    %383 = arith.mulf %380, %382 : vector<8x128xf32>
    %384 = arith.addf %336, %383 : vector<8x128xf32>
    %c73 = arith.constant 73 : index
    %385 = memref.load %arg1[%c73] : memref<99xf32, #tpu.memory_space<smem>>
    %386 = vector.broadcast %385 : f32 to vector<8x128xf32>
    %387 = arith.mulf %7, %386 : vector<8x128xf32>
    %c81 = arith.constant 81 : index
    %388 = memref.load %arg1[%c81] : memref<99xf32, #tpu.memory_space<smem>>
    %389 = vector.broadcast %388 : f32 to vector<8x128xf32>
    %390 = arith.mulf %10, %389 : vector<8x128xf32>
    %391 = arith.addf %387, %390 : vector<8x128xf32>
    %c89 = arith.constant 89 : index
    %392 = memref.load %arg1[%c89] : memref<99xf32, #tpu.memory_space<smem>>
    %393 = vector.broadcast %392 : f32 to vector<8x128xf32>
    %394 = arith.addf %391, %393 : vector<8x128xf32>
    %cst_28 = arith.constant 0.000000e+00 : f32
    %395 = vector.broadcast %cst_28 : f32 to vector<8x128xf32>
    %396 = arith.maximumf %394, %395 : vector<8x128xf32>
    %c97 = arith.constant 97 : index
    %397 = memref.load %arg1[%c97] : memref<99xf32, #tpu.memory_space<smem>>
    %398 = vector.broadcast %397 : f32 to vector<8x128xf32>
    %399 = arith.mulf %396, %398 : vector<8x128xf32>
    %400 = arith.addf %352, %399 : vector<8x128xf32>
    %401 = arith.mulf %368, %368 : vector<8x128xf32>
    %402 = arith.mulf %400, %400 : vector<8x128xf32>
    %403 = arith.subf %4, %401 : vector<8x128xf32>
    %404 = arith.mulf %403, %403 : vector<8x128xf32>
    %405 = arith.mulf %402, %404 : vector<8x128xf32>
    %406 = arith.addf %405, %384 : vector<8x128xf32>
    %cst_29 = arith.constant 0.000000e+00 : f32
    %407 = vector.broadcast %cst_29 : f32 to vector<8x128xf32>
    %408 = arith.subf %407, %406 : vector<8x128xf32>
    %409 = math.exp %408 : vector<8x128xf32>
    %cst_30 = arith.constant 1.000000e+00 : f32
    %410 = vector.broadcast %cst_30 : f32 to vector<8x128xf32>
    %411 = arith.addf %410, %409 : vector<8x128xf32>
    %cst_31 = arith.constant 1.000000e+00 : f32
    %412 = vector.broadcast %cst_31 : f32 to vector<8x128xf32>
    %413 = arith.divf %412, %411 : vector<8x128xf32>
    %c0_32 = arith.constant 0 : index
    %414 = arith.index_cast %1 : i32 to index
    %c0_33 = arith.constant 0 : index
    %415 = vector.load %arg3[%c0_32, %414, %c0_33] : memref<3x8x128xf32, #tpu.memory_space<vmem>>, vector<1x8x128xf32>
    %416 = vector.shape_cast %415 : vector<1x8x128xf32> to vector<8x128xf32>
    %417 = vector.shape_cast %413 : vector<8x128xf32> to vector<1x8x128xf32>
    tpu.vector_store %arg3[%c0_32, %414, %c0_33], %417 {strides = array<i32>} : memref<3x8x128xf32, #tpu.memory_space<vmem>>, vector<1x8x128xf32>,
    %c1_34 = arith.constant 1 : index
    %418 = arith.index_cast %1 : i32 to index
    %c0_35 = arith.constant 0 : index
    %419 = vector.load %arg3[%c1_34, %418, %c0_35] : memref<3x8x128xf32, #tpu.memory_space<vmem>>, vector<1x8x128xf32>
    %420 = vector.shape_cast %419 : vector<1x8x128xf32> to vector<8x128xf32>
    %421 = vector.shape_cast %384 : vector<8x128xf32> to vector<1x8x128xf32>
    tpu.vector_store %arg3[%c1_34, %418, %c0_35], %421 {strides = array<i32>} : memref<3x8x128xf32, #tpu.memory_space<vmem>>, vector<1x8x128xf32>,
    %c2_36 = arith.constant 2 : index
    %422 = arith.index_cast %1 : i32 to index
    %c0_37 = arith.constant 0 : index
    %423 = vector.load %arg3[%c2_36, %422, %c0_37] : memref<3x8x128xf32, #tpu.memory_space<vmem>>, vector<1x8x128xf32>
    %424 = vector.shape_cast %423 : vector<1x8x128xf32> to vector<8x128xf32>
    %425 = vector.shape_cast %401 : vector<8x128xf32> to vector<1x8x128xf32>
    tpu.vector_store %arg3[%c2_36, %422, %c0_37], %425 {strides = array<i32>} : memref<3x8x128xf32, #tpu.memory_space<vmem>>, vector<1x8x128xf32>,
    %c1_i32 = arith.constant 1 : i32
    return
  }
  func.func @transform_0(%arg0: i32) -> i32 {
    %c0_i32 = arith.constant 0 : i32
    %c0_i32_0 = arith.constant 0 : i32
    return %c0_i32 : i32
  }
  func.func @transform_1(%arg0: i32) -> (i32, i32, i32) {
    %c0_i32 = arith.constant 0 : i32
    %c0_i32_0 = arith.constant 0 : i32
    %c0_i32_1 = arith.constant 0 : i32
    return %c0_i32, %arg0, %c0_i32_0 : i32, i32, i32
  }
  func.func @transform_2(%arg0: i32) -> (i32, i32, i32) {
    %c0_i32 = arith.constant 0 : i32
    %c0_i32_0 = arith.constant 0 : i32
    %c0_i32_1 = arith.constant 0 : i32
    return %c0_i32, %arg0, %c0_i32_0 : i32, i32, i32
  }
}

</mosaic_0001>

<llo_original>
// kernel: naf_forward.1
$region0: #{naf_forward.1}
  #allocation0 [shape = 'u32[]', space=smem, size = 0x4, offset = 0x4, fixed_abs, tag = 'smem constant byte address 0x4 - core index']
  #allocation1 [shape = 'u32[144,128]{1,0:T(1,128)}', space=vmem, size = 0x12000, scoped, tag = 'internal scratch']
  %s0 = inlined_call_operand.vmem [shape: f32[99], index: 0, kind: input, shape index: {}]
  %s1 = inlined_call_operand.vmem [shape: f32[3,8,128], index: 1, kind: input, shape index: {}]
  %s2 = inlined_call_operand.vmem [shape: f32[3,8,128], index: 2, kind: output, shape index: {}]
  %s3 = sld [smem:[#allocation0]]
  $region22: #{naf_forward.1} parent=0
    _
  %s5 = ssub.s32 1, %s3
  %s6 = scalar_select 0, %s5, %s3
  $region1: #{naf_forward.1} parent=0
    #allocation2 [shape = 'u8[512]{0}', space=smem, size = 0x200, scoped, tag = 'input window, operand 0, single buffered']
    #allocation3 [shape = 's32[1]{0}', space=sflag, size = 0x4, scoped, tag = 'scoped memory for naf_forward.1']
    %7 = vsyncpa [#allocation3], 0
    // Predicated region
    $region2: #{naf_forward.1} parent=1 // pred_check
      _
    $region3: #{naf_forward.1} parent=1 // pred_check_branch
      %9 = sbr.rel (0) target = $region5
    $region4: #{naf_forward.1} parent=1 // pred_region
      %s11 = ssub.s32 16, 16
      %12 = vsyncadd [#allocation3], %s11
      %s14 = sshll.u32 %s0, 4
      %s15 = int_to_ptr.vmem [resolvable:$true] %s14
      %17 = dma.vmem_to_smem %s15, 16, [#allocation2], [#allocation3]
    $region5: #{naf_forward.1} parent=1 // pred_fallthru
      _
    // Predicated region
    $region6: #{naf_forward.1} parent=1 // pred_check
      _
    $region7: #{naf_forward.1} parent=1 // pred_check_branch
      %19 = sbr.rel (0) target = $region9
    $region8: #{naf_forward.1} parent=1 // pred_region
      _
    $region9: #{naf_forward.1} parent=1 // pred_fallthru
      _
    // Predicated region
    $region10: #{naf_forward.1} parent=1 // pred_check
      _
    $region11: #{naf_forward.1} parent=1 // pred_check_branch
      %21 = sbr.rel (0) target = $region13
    $region12: #{naf_forward.1} parent=1 // pred_region
      %22 = dma.done [#allocation3], 16
    $region13: #{naf_forward.1} parent=1 // pred_fallthru
      _
    %23 = sfence
    %v24 = vld [vmem:[%s1] sm:$0xff]
    %s25 = sadd.s32 0, 8
    %s26 = scalar_lea.vmem %s1, %s25
    %v27 = vld [vmem:[%s26] sm:$0xff]
    %s28 = sadd.s32 0, 16
    %s29 = scalar_lea.vmem %s1, %s28
    %v30 = vld [vmem:[%s29] sm:$0xff]
    %s31 = sld [smem:[#allocation2 + $0x20]]
    %v32 = vstv %s31
    %s33 = sld [smem:[#allocation2 + $0x41]]
    %v34 = vstv %s33
    %s35 = sld [smem:[#allocation2 + $0x62]]
    %v36 = vstv %s35
    %s37 = sld [smem:[#allocation2]]
    %v38 = vstv %s37
    %v39 = vmul.f32 %v27, %v38
    %s40 = sld [smem:[#allocation2 + $0x8]]
    %v41 = vstv %s40
    %v42 = vmul.f32 %v30, %v41
    %v43 = vadd.f32 %v39, %v42
    %s44 = sld [smem:[#allocation2 + $0x10]]
    %v45 = vstv %s44
    %v46 = vadd.f32 %v43, %v45
    %v47 = vmax.f32 %v46, 0.0
    %s48 = sld [smem:[#allocation2 + $0x18]]
    %v49 = vstv %s48
    %v50 = vmul.f32 %v47, %v49
    %v51 = vadd.f32 %v32, %v50
    %s52 = sld [smem:[#allocation2 + $0x21]]
    %v53 = vstv %s52
    %v54 = vmul.f32 %v27, %v53
    %s55 = sld [smem:[#allocation2 + $0x29]]
    %v56 = vstv %s55
    %v57 = vmul.f32 %v30, %v56
    %v58 = vadd.f32 %v54, %v57
    %s59 = sld [smem:[#allocation2 + $0x31]]
    %v60 = vstv %s59
    %v61 = vadd.f32 %v58, %v60
    %v62 = vmax.f32 %v61, 0.0
    %s63 = sld [smem:[#allocation2 + $0x39]]
    %v64 = vstv %s63
    %v65 = vmul.f32 %v62, %v64
    %v66 = vadd.f32 %v34, %v65
    %s67 = sld [smem:[#allocation2 + $0x42]]
    %v68 = vstv %s67
    %v69 = vmul.f32 %v27, %v68
    %s70 = sld [smem:[#allocation2 + $0x4a]]
    %v71 = vstv %s70
    %v72 = vmul.f32 %v30, %v71
    %v73 = vadd.f32 %v69, %v72
    %s74 = sld [smem:[#allocation2 + $0x52]]
    %v75 = vstv %s74
    %v76 = vadd.f32 %v73, %v75
    %v77 = vmax.f32 %v76, 0.0
    %s78 = sld [smem:[#allocation2 + $0x5a]]
    %v79 = vstv %s78
    %v80 = vmul.f32 %v77, %v79
    %v81 = vadd.f32 %v36, %v80
    %s82 = sld [smem:[#allocation2 + $0x1]]
    %v83 = vstv %s82
    %v84 = vmul.f32 %v27, %v83
    %s85 = sld [smem:[#allocation2 + $0x9]]
    %v86 = vstv %s85
    %v87 = vmul.f32 %v30, %v86
    %v88 = vadd.f32 %v84, %v87
    %s89 = sld [smem:[#allocation2 + $0x11]]
    %v90 = vstv %s89
    %v91 = vadd.f32 %v88, %v90
    %v92 = vmax.f32 %v91, 0.0
    %s93 = sld [smem:[#allocation2 + $0x19]]
    %v94 = vstv %s93
    %v95 = vmul.f32 %v92, %v94
    %v96 = vadd.f32 %v51, %v95
    %s97 = sld [smem:[#allocation2 + $0x22]]
    %v98 = vstv %s97
    %v99 = vmul.f32 %v27, %v98
    %s100 = sld [smem:[#allocation2 + $0x2a]]
    %v101 = vstv %s100
    %v102 = vmul.f32 %v30, %v101
    %v103 = vadd.f32 %v99, %v102
    %s104 = sld [smem:[#allocation2 + $0x32]]
    %v105 = vstv %s104
    %v106 = vadd.f32 %v103, %v105
    %v107 = vmax.f32 %v106, 0.0
    %s108 = sld [smem:[#allocation2 + $0x3a]]
    %v109 = vstv %s108
    %v110 = vmul.f32 %v107, %v109
    %v111 = vadd.f32 %v66, %v110
    %s112 = sld [smem:[#allocation2 + $0x43]]
    %v113 = vstv %s112
    %v114 = vmul.f32 %v27, %v113
    %s115 = sld [smem:[#allocation2 + $0x4b]]
    %v116 = vstv %s115
    %v117 = vmul.f32 %v30, %v116
    %v118 = vadd.f32 %v114, %v117
    %s119 = sld [smem:[#allocation2 + $0x53]]
    %v120 = vstv %s119
    %v121 = vadd.f32 %v118, %v120
    %v122 = vmax.f32 %v121, 0.0
    %s123 = sld [smem:[#allocation2 + $0x5b]]
    %v124 = vstv %s123
    %v125 = vmul.f32 %v122, %v124
    %v126 = vadd.f32 %v81, %v125
    %s127 = sld [smem:[#allocation2 + $0x2]]
    %v128 = vstv %s127
    %v129 = vmul.f32 %v27, %v128
    %s130 = sld [smem:[#allocation2 + $0xa]]
    %v131 = vstv %s130
    %v132 = vmul.f32 %v30, %v131
    %v133 = vadd.f32 %v129, %v132
    %s134 = sld [smem:[#allocation2 + $0x12]]
    %v135 = vstv %s134
    %v136 = vadd.f32 %v133, %v135
    %v137 = vmax.f32 %v136, 0.0
    %s138 = sld [smem:[#allocation2 + $0x1a]]
    %v139 = vstv %s138
    %v140 = vmul.f32 %v137, %v139
    %v141 = vadd.f32 %v96, %v140
    %s142 = sld [smem:[#allocation2 + $0x23]]
    %v143 = vstv %s142
    %v144 = vmul.f32 %v27, %v143
    %s145 = sld [smem:[#allocation2 + $0x2b]]
    %v146 = vstv %s145
    %v147 = vmul.f32 %v30, %v146
    %v148 = vadd.f32 %v144, %v147
    %s149 = sld [smem:[#allocation2 + $0x33]]
    %v150 = vstv %s149
    %v151 = vadd.f32 %v148, %v150
    %v152 = vmax.f32 %v151, 0.0
    %s153 = sld [smem:[#allocation2 + $0x3b]]
    %v154 = vstv %s153
    %v155 = vmul.f32 %v152, %v154
    %v156 = vadd.f32 %v111, %v155
    %s157 = sld [smem:[#allocation2 + $0x44]]
    %v158 = vstv %s157
    %v159 = vmul.f32 %v27, %v158
    %s160 = sld [smem:[#allocation2 + $0x4c]]
    %v161 = vstv %s160
    %v162 = vmul.f32 %v30, %v161
    %v163 = vadd.f32 %v159, %v162
    %s164 = sld [smem:[#allocation2 + $0x54]]
    %v165 = vstv %s164
    %v166 = vadd.f32 %v163, %v165
    %v167 = vmax.f32 %v166, 0.0
    %s168 = sld [smem:[#allocation2 + $0x5c]]
    %v169 = vstv %s168
    %v170 = vmul.f32 %v167, %v169
    %v171 = vadd.f32 %v126, %v170
    %s172 = sld [smem:[#allocation2 + $0x3]]
    %v173 = vstv %s172
    %v174 = vmul.f32 %v27, %v173
    %s175 = sld [smem:[#allocation2 + $0xb]]
    %v176 = vstv %s175
    %v177 = vmul.f32 %v30, %v176
    %v178 = vadd.f32 %v174, %v177
    %s179 = sld [smem:[#allocation2 + $0x13]]
    %v180 = vstv %s179
    %v181 = vadd.f32 %v178, %v180
    %v182 = vmax.f32 %v181, 0.0
    %s183 = sld [smem:[#allocation2 + $0x1b]]
    %v184 = vstv %s183
    %v185 = vmul.f32 %v182, %v184
    %v186 = vadd.f32 %v141, %v185
    %s187 = sld [smem:[#allocation2 + $0x24]]
    %v188 = vstv %s187
    %v189 = vmul.f32 %v27, %v188
    %s190 = sld [smem:[#allocation2 + $0x2c]]
    %v191 = vstv %s190
    %v192 = vmul.f32 %v30, %v191
    %v193 = vadd.f32 %v189, %v192
    %s194 = sld [smem:[#allocation2 + $0x34]]
    %v195 = vstv %s194
    %v196 = vadd.f32 %v193, %v195
    %v197 = vmax.f32 %v196, 0.0
    %s198 = sld [smem:[#allocation2 + $0x3c]]
    %v199 = vstv %s198
    %v200 = vmul.f32 %v197, %v199
    %v201 = vadd.f32 %v156, %v200
    %s202 = sld [smem:[#allocation2 + $0x45]]
    %v203 = vstv %s202
    %v204 = vmul.f32 %v27, %v203
    %s205 = sld [smem:[#allocation2 + $0x4d]]
    %v206 = vstv %s205
    %v207 = vmul.f32 %v30, %v206
    %v208 = vadd.f32 %v204, %v207
    %s209 = sld [smem:[#allocation2 + $0x55]]
    %v210 = vstv %s209
    %v211 = vadd.f32 %v208, %v210
    %v212 = vmax.f32 %v211, 0.0
    %s213 = sld [smem:[#allocation2 + $0x5d]]
    %v214 = vstv %s213
    %v215 = vmul.f32 %v212, %v214
    %v216 = vadd.f32 %v171, %v215
    %s217 = sld [smem:[#allocation2 + $0x4]]
    %v218 = vstv %s217
    %v219 = vmul.f32 %v27, %v218
    %s220 = sld [smem:[#allocation2 + $0xc]]
    %v221 = vstv %s220
    %v222 = vmul.f32 %v30, %v221
    %v223 = vadd.f32 %v219, %v222
    %s224 = sld [smem:[#allocation2 + $0x14]]
    %v225 = vstv %s224
    %v226 = vadd.f32 %v223, %v225
    %v227 = vmax.f32 %v226, 0.0
    %s228 = sld [smem:[#allocation2 + $0x1c]]
    %v229 = vstv %s228
    %v230 = vmul.f32 %v227, %v229
    %v231 = vadd.f32 %v186, %v230
    %s232 = sld [smem:[#allocation2 + $0x25]]
    %v233 = vstv %s232
    %v234 = vmul.f32 %v27, %v233
    %s235 = sld [smem:[#allocation2 + $0x2d]]
    %v236 = vstv %s235
    %v237 = vmul.f32 %v30, %v236
    %v238 = vadd.f32 %v234, %v237
    %s239 = sld [smem:[#allocation2 + $0x35]]
    %v240 = vstv %s239
    %v241 = vadd.f32 %v238, %v240
    %v242 = vmax.f32 %v241, 0.0
    %s243 = sld [smem:[#allocation2 + $0x3d]]
    %v244 = vstv %s243
    %v245 = vmul.f32 %v242, %v244
    %v246 = vadd.f32 %v201, %v245
    %s247 = sld [smem:[#allocation2 + $0x46]]
    %v248 = vstv %s247
    %v249 = vmul.f32 %v27, %v248
    %s250 = sld [smem:[#allocation2 + $0x4e]]
    %v251 = vstv %s250
    %v252 = vmul.f32 %v30, %v251
    %v253 = vadd.f32 %v249, %v252
    %s254 = sld [smem:[#allocation2 + $0x56]]
    %v255 = vstv %s254
    %v256 = vadd.f32 %v253, %v255
    %v257 = vmax.f32 %v256, 0.0
    %s258 = sld [smem:[#allocation2 + $0x5e]]
    %v259 = vstv %s258
    %v260 = vmul.f32 %v257, %v259
    %v261 = vadd.f32 %v216, %v260
    %s262 = sld [smem:[#allocation2 + $0x5]]
    %v263 = vstv %s262
    %v264 = vmul.f32 %v27, %v263
    %s265 = sld [smem:[#allocation2 + $0xd]]
    %v266 = vstv %s265
    %v267 = vmul.f32 %v30, %v266
    %v268 = vadd.f32 %v264, %v267
    %s269 = sld [smem:[#allocation2 + $0x15]]
    %v270 = vstv %s269
    %v271 = vadd.f32 %v268, %v270
    %v272 = vmax.f32 %v271, 0.0
    %s273 = sld [smem:[#allocation2 + $0x1d]]
    %v274 = vstv %s273
    %v275 = vmul.f32 %v272, %v274
    %v276 = vadd.f32 %v231, %v275
    %s277 = sld [smem:[#allocation2 + $0x26]]
    %v278 = vstv %s277
    %v279 = vmul.f32 %v27, %v278
    %s280 = sld [smem:[#allocation2 + $0x2e]]
    %v281 = vstv %s280
    %v282 = vmul.f32 %v30, %v281
    %v283 = vadd.f32 %v279, %v282
    %s284 = sld [smem:[#allocation2 + $0x36]]
    %v285 = vstv %s284
    %v286 = vadd.f32 %v283, %v285
    %v287 = vmax.f32 %v286, 0.0
    %s288 = sld [smem:[#allocation2 + $0x3e]]
    %v289 = vstv %s288
    %v290 = vmul.f32 %v287, %v289
    %v291 = vadd.f32 %v246, %v290
    %s292 = sld [smem:[#allocation2 + $0x47]]
    %v293 = vstv %s292
    %v294 = vmul.f32 %v27, %v293
    %s295 = sld [smem:[#allocation2 + $0x4f]]
    %v296 = vstv %s295
    %v297 = vmul.f32 %v30, %v296
    %v298 = vadd.f32 %v294, %v297
    %s299 = sld [smem:[#allocation2 + $0x57]]
    %v300 = vstv %s299
    %v301 = vadd.f32 %v298, %v300
    %v302 = vmax.f32 %v301, 0.0
    %s303 = sld [smem:[#allocation2 + $0x5f]]
    %v304 = vstv %s303
    %v305 = vmul.f32 %v302, %v304
    %v306 = vadd.f32 %v261, %v305
    %s307 = sld [smem:[#allocation2 + $0x6]]
    %v308 = vstv %s307
    %v309 = vmul.f32 %v27, %v308
    %s310 = sld [smem:[#allocation2 + $0xe]]
    %v311 = vstv %s310
    %v312 = vmul.f32 %v30, %v311
    %v313 = vadd.f32 %v309, %v312
    %s314 = sld [smem:[#allocation2 + $0x16]]
    %v315 = vstv %s314
    %v316 = vadd.f32 %v313, %v315
    %v317 = vmax.f32 %v316, 0.0
    %s318 = sld [smem:[#allocation2 + $0x1e]]
    %v319 = vstv %s318
    %v320 = vmul.f32 %v317, %v319
    %v321 = vadd.f32 %v276, %v320
    %s322 = sld [smem:[#allocation2 + $0x27]]
    %v323 = vstv %s322
    %v324 = vmul.f32 %v27, %v323
    %s325 = sld [smem:[#allocation2 + $0x2f]]
    %v326 = vstv %s325
    %v327 = vmul.f32 %v30, %v326
    %v328 = vadd.f32 %v324, %v327
    %s329 = sld [smem:[#allocation2 + $0x37]]
    %v330 = vstv %s329
    %v331 = vadd.f32 %v328, %v330
    %v332 = vmax.f32 %v331, 0.0
    %s333 = sld [smem:[#allocation2 + $0x3f]]
    %v334 = vstv %s333
    %v335 = vmul.f32 %v332, %v334
    %v336 = vadd.f32 %v291, %v335
    %s337 = sld [smem:[#allocation2 + $0x48]]
    %v338 = vstv %s337
    %v339 = vmul.f32 %v27, %v338
    %s340 = sld [smem:[#allocation2 + $0x50]]
    %v341 = vstv %s340
    %v342 = vmul.f32 %v30, %v341
    %v343 = vadd.f32 %v339, %v342
    %s344 = sld [smem:[#allocation2 + $0x58]]
    %v345 = vstv %s344
    %v346 = vadd.f32 %v343, %v345
    %v347 = vmax.f32 %v346, 0.0
    %s348 = sld [smem:[#allocation2 + $0x60]]
    %v349 = vstv %s348
    %v350 = vmul.f32 %v347, %v349
    %v351 = vadd.f32 %v306, %v350
    %s352 = sld [smem:[#allocation2 + $0x7]]
    %v353 = vstv %s352
    %v354 = vmul.f32 %v27, %v353
    %s355 = sld [smem:[#allocation2 + $0xf]]
    %v356 = vstv %s355
    %v357 = vmul.f32 %v30, %v356
    %v358 = vadd.f32 %v354, %v357
    %s359 = sld [smem:[#allocation2 + $0x17]]
    %v360 = vstv %s359
    %v361 = vadd.f32 %v358, %v360
    %v362 = vmax.f32 %v361, 0.0
    %s363 = sld [smem:[#allocation2 + $0x1f]]
    %v364 = vstv %s363
    %v365 = vmul.f32 %v362, %v364
    %v366 = vadd.f32 %v321, %v365
    %s367 = sld [smem:[#allocation2 + $0x28]]
    %v368 = vstv %s367
    %v369 = vmul.f32 %v27, %v368
    %s370 = sld [smem:[#allocation2 + $0x30]]
    %v371 = vstv %s370
    %v372 = vmul.f32 %v30, %v371
    %v373 = vadd.f32 %v369, %v372
    %s374 = sld [smem:[#allocation2 + $0x38]]
    %v375 = vstv %s374
    %v376 = vadd.f32 %v373, %v375
    %v377 = vmax.f32 %v376, 0.0
    %s378 = sld [smem:[#allocation2 + $0x40]]
    %v379 = vstv %s378
    %v380 = vmul.f32 %v377, %v379
    %v381 = vadd.f32 %v336, %v380
    %s382 = sld [smem:[#allocation2 + $0x49]]
    %v383 = vstv %s382
    %v384 = vmul.f32 %v27, %v383
    %s385 = sld [smem:[#allocation2 + $0x51]]
    %v386 = vstv %s385
    %v387 = vmul.f32 %v30, %v386
    %v388 = vadd.f32 %v384, %v387
    %s389 = sld [smem:[#allocation2 + $0x59]]
    %v390 = vstv %s389
    %v391 = vadd.f32 %v388, %v390
    %v392 = vmax.f32 %v391, 0.0
    %s393 = sld [smem:[#allocation2 + $0x61]]
    %v394 = vstv %s393
    %v395 = vmul.f32 %v392, %v394
    %v396 = vadd.f32 %v351, %v395
    %v397 = vmul.f32 %v366, %v366
    %v398 = vmul.f32 %v396, %v396
    %v399 = vsub.f32 %v24, %v397
    %v400 = vmul.f32 %v399, %v399
    %v401 = vmul.f32 %v398, %v400
    %v402 = vadd.f32 %v401, %v381
    %v403 = vsub.f32 0.0, %v402
    %v404 = vmul.f32 %v403, 1.442695
    %v405 = vpow.pop %v404
    %v406 = vadd.f32 %v405, 1.0
    %v407 = vrcp.pop %v406
    %v408 = vmul.f32 1.0, %v407
    %409 = vst [vmem:[%s2] sm:$0xff] %v408
    %s410 = scalar_lea.vmem %s2, %s25
    %411 = vst [vmem:[%s410] sm:$0xff] %v381
    %s412 = scalar_lea.vmem %s2, %s28
    %413 = vst [vmem:[%s412] sm:$0xff] %v397
    // Predicated region
    $region14: #{naf_forward.1} parent=1 // pred_check
      _
    $region15: #{naf_forward.1} parent=1 // pred_check_branch
      %415 = sbr.rel (0) target = $region17
    $region16: #{naf_forward.1} parent=1 // pred_region
      _
    $region17: #{naf_forward.1} parent=1 // pred_fallthru
      _
    // Predicated region
    $region18: #{naf_forward.1} parent=1 // pred_check
      _
    $region19: #{naf_forward.1} parent=1 // pred_check_branch
      %417 = sbr.rel (0) target = $region21
    $region20: #{naf_forward.1} parent=1 // pred_region
      _
    $region21: #{naf_forward.1} parent=1 // pred_fallthru
      _
    %418 = vsyncpa [#allocation3], 1

</llo_original>
